<compile_context>
chip_gen: v5e
topology: v5e:2x2
jax: 0.10.0
libtpu: 0.0.40
codegen_flags: <defaults>
</compile_context>

<pallas_src>
import jax
import jax.numpy as jnp
from jax.experimental import pallas as pl
from jax.experimental.pallas import tpu as pltpu


def linear_kernel(xt_ref, wb_ref, ot_ref):
    # xt_ref: (in_f, B)      -- batch on lanes (lane-dense)
    # wb_ref: (in_f + 1, 1)  -- rows 0..in_f-1 = W^T, row in_f = bias
    # ot_ref: (1, B)
    in_f = wb_ref.shape[0] - 1
    xt = xt_ref[...]                          # (in_f, B) f32
    w = wb_ref[0:in_f, :]                     # (in_f, 1), broadcasts across lanes
    b = wb_ref[in_f:in_f + 1, :]              # (1, 1)
    # VPU multiply + XLU sublane reduce; f32 accumulation, no MXU involved.
    acc = jnp.sum(xt * w, axis=0, keepdims=True)   # (1, B)
    ot_ref[...] = (acc + b).astype(ot_ref.dtype)


def linear_pallas(x: jax.Array, weight: jax.Array, bias: jax.Array) -> jax.Array:
    """y = x @ weight.T + bias, matching torch.nn.Linear(10, 1)."""
    B, in_f = x.shape
    out_f = weight.shape[0]                   # == 1 for this module

    xt = x.T                                  # (in_f, B): batch -> lanes
    # Single parameter operand: [W^T ; b] with shape (in_f + 1, out_f).
    wb = jnp.concatenate(
        [weight.T.astype(x.dtype), bias.reshape(1, out_f).astype(x.dtype)],
        axis=0,
    )

    ot = pl.pallas_call(
        linear_kernel,
        out_shape=jax.ShapeDtypeStruct((out_f, B), x.dtype),
        in_specs=[
            pl.BlockSpec(memory_space=pltpu.MemorySpace.VMEM),
            pl.BlockSpec(memory_space=pltpu.MemorySpace.VMEM),
        ],
        out_specs=pl.BlockSpec(memory_space=pltpu.MemorySpace.VMEM),
    )(xt, wb)
    return ot.T                               # (B, out_f), as nn.Linear returns


def init_params(key):
    """Deterministic init mimicking torch.nn.Linear default (U(-1/sqrt(fan_in), +))."""
    in_f, out_f = 10, 1
    k_w, k_b = jax.random.split(key)
    bound = 1.0 / jnp.sqrt(in_f)
    weight = jax.random.uniform(k_w, (out_f, in_f), jnp.float32, -bound, bound)
    bias = jax.random.uniform(k_b, (out_f,), jnp.float32, -bound, bound)
    return weight, bias


if __name__ == "__main__":
    key = jax.random.PRNGKey(0)
    k_x, k_p = jax.random.split(key)

    B = 8
    x = jax.random.normal(k_x, (B, 10), jnp.float32)
    weight, bias = init_params(k_p)

    out = linear_pallas(x, weight, bias)
    out = jax.block_until_ready(out)

    # Sanity check against a plain-JAX reference of the same math.
    ref = x @ weight.T + bias
    assert out.shape == (B, 1), out.shape
    assert jnp.allclose(out, ref, atol=1e-5, rtol=1e-5), (out, ref)

    print("KERNEL_OK")
</pallas_src>

<mosaic_0001>
module attributes {stable_mosaic.version = 11 : i64} {
  func.func @linear_kernel(%arg0: memref<10x8xf32, #tpu.memory_space<vmem>>, %arg1: memref<11x1xf32, #tpu.memory_space<vmem>>, %arg2: memref<1x8xf32, #tpu.memory_space<vmem>>) attributes {dimension_semantics = [], scalar_prefetch = 0 : i64, scratch_operands = 0 : i64, tpu.core_type = #tpu.core_type<tc>} {
    %c0 = arith.constant 0 : index
    %c0_0 = arith.constant 0 : index
    %0 = vector.load %arg0[%c0, %c0_0] : memref<10x8xf32, #tpu.memory_space<vmem>>, vector<10x8xf32>
    %c0_1 = arith.constant 0 : index
    %c0_2 = arith.constant 0 : index
    %1 = vector.load %arg1[%c0_1, %c0_2] : memref<11x1xf32, #tpu.memory_space<vmem>>, vector<10x1xf32>
    %c10 = arith.constant 10 : index
    %c0_3 = arith.constant 0 : index
    %2 = vector.load %arg1[%c10, %c0_3] : memref<11x1xf32, #tpu.memory_space<vmem>>, vector<1x1xf32>
    %3 = vector.broadcast %1 : vector<10x1xf32> to vector<10x8xf32>
    %4 = arith.mulf %0, %3 : vector<10x8xf32>
    %cst = arith.constant dense<0.000000e+00> : vector<8xf32>
    %5 = vector.multi_reduction <add>, %4, %cst [0] : vector<10x8xf32> to vector<8xf32>
    %6 = vector.shape_cast %5 : vector<8xf32> to vector<1x8xf32>
    %7 = vector.broadcast %2 : vector<1x1xf32> to vector<1x8xf32>
    %8 = arith.addf %6, %7 : vector<1x8xf32>
    %c0_4 = arith.constant 0 : index
    %c0_5 = arith.constant 0 : index
    %9 = vector.load %arg2[%c0_4, %c0_5] : memref<1x8xf32, #tpu.memory_space<vmem>>, vector<1x8xf32>
    tpu.vector_store %arg2[%c0_4, %c0_5], %8 {strides = array<i32>} : memref<1x8xf32, #tpu.memory_space<vmem>>, vector<1x8xf32>,
    return
  }
}

</mosaic_0001>

<llo_original>
// kernel: tpu_custom_call.1
$region0: #{tpu_custom_call.1}
  #allocation0 [shape = 'u32[]', space=smem, size = 0x4, offset = 0x4, fixed_abs, tag = 'smem constant byte address 0x4 - core index']
  #allocation1 [shape = 'u32[72,128]{1,0:T(1,128)}', space=vmem, size = 0x9000, scoped, tag = 'internal scratch']
  %s0 = inlined_call_operand.vmem [shape: f32[10,8], index: 0, kind: input, shape index: {}]
  %s1 = inlined_call_operand.vmem [shape: f32[11,1], index: 1, kind: input, shape index: {}]
  %s2 = inlined_call_operand.hbm [shape: f32[1,8], index: 2, kind: output, shape index: {}]
  %s3 = sld [smem:[#allocation0]]
  $region18: #{tpu_custom_call.1} parent=0
    _
  %s5 = ssub.s32 1, %s3
  %s6 = scalar_select 0, %s5, %s3
  $region1: #{tpu_custom_call.1} parent=0
    #allocation2 [shape = 'u8[512]{0}', space=vmem, size = 0x400, scoped, tag = 'output window, operand 0, single buffered']
    #allocation3 [shape = 's32[1]{0}', space=sflag, size = 0x4, scoped, tag = 'scoped memory for tpu_custom_call.1']
    %7 = vsyncpa [#allocation3], 0
    // Predicated region
    $region2: #{tpu_custom_call.1} parent=1 // pred_check
      _
    $region3: #{tpu_custom_call.1} parent=1 // pred_check_branch
      %9 = sbr.rel (0) target = $region5
    $region4: #{tpu_custom_call.1} parent=1 // pred_region
      _
    $region5: #{tpu_custom_call.1} parent=1 // pred_fallthru
      _
    // Predicated region
    $region6: #{tpu_custom_call.1} parent=1 // pred_check
      _
    $region7: #{tpu_custom_call.1} parent=1 // pred_check_branch
      %11 = sbr.rel (0) target = $region9
    $region8: #{tpu_custom_call.1} parent=1 // pred_region
      _
    $region9: #{tpu_custom_call.1} parent=1 // pred_fallthru
      _
    %v12 = vld [vmem:[%s0] sm:$0xff]
    %v13 = vld [vmem:[%s0 + $0x8] sm:$0x3]
    %v14 = vld [vmem:[%s1] sm:$0xff]
    %v15 = vld [vmem:[%s1 + $0x8] sm:$0x3]
    %v16 = vld [vmem:[%s1 + $0xa] sm:$0x1]
    %18 = vset.pattern.permute.xlu0 0
    %19 = vperm.xlu0 %18, %v14
    %v20 = vpop.permute.xlu0 %19
    %23 = vset.pattern.permute.xlu0 0
    %24 = vperm.xlu0 %23, %v15
    %v25 = vpop.permute.xlu0 %24
    %v27 = vmul.f32 %v12, %v20
    %v28 = vmul.f32 %v13, %v25
    %vm29 = vcmask 64512
    %v30 = vsel %vm29, %v27, 0.0
    %vm31 = vcmask 58368
    %v32 = vsel %vm31, %v28, 0.0
    %v33 = vadd.f32 %v30, %v32
    %v34 = vrot.slane %v33, 4
    %v35 = vadd.f32 %v33, %v34
    %v36 = vrot.slane %v35, 2
    %v37 = vadd.f32 %v35, %v36
    %v38 = vrot.slane %v37, 1
    %v39 = vadd.f32 %v37, %v38
    %41 = vset.pattern.permute.xlu0 0
    %42 = vperm.xlu0 %41, %v16
    %v43 = vpop.permute.xlu0 %42
    %v45 = vadd.f32 %v39, %v43
    %vm46 = vcmask 57344
    %47 = vst.msk [vmem:[#allocation2] sm:$0x1] %vm46, %v45
    // Predicated region
    $region10: #{tpu_custom_call.1} parent=1 // pred_check
      _
    $region11: #{tpu_custom_call.1} parent=1 // pred_check_branch
      %49 = sbr.rel (0) target = $region13
    $region12: #{tpu_custom_call.1} parent=1 // pred_region
      %51 = vsyncadd [#allocation3], 0
      %s53 = sshll.u32 [#allocation2], 4
      %s54 = int_to_ptr.vmem [resolvable:$true] %s53
      %s55 = sshll.u32 %s2, 4
      %s56 = int_to_ptr.hbm [resolvable:$true] %s55
      %58 = dma.vmem_to_hbm [thread:$0]  %s54, 16, %s56, [#allocation3]
    $region13: #{tpu_custom_call.1} parent=1 // pred_fallthru
      _
    // Predicated region
    $region14: #{tpu_custom_call.1} parent=1 // pred_check
      _
    $region15: #{tpu_custom_call.1} parent=1 // pred_check_branch
      %60 = sbr.rel (0) target = $region17
    $region16: #{tpu_custom_call.1} parent=1 // pred_region
      %62 = dma.done [#allocation3], 16
    $region17: #{tpu_custom_call.1} parent=1 // pred_fallthru
      _
    %63 = vsyncpa [#allocation3], 1

</llo_original>
